<compile_context>
chip_gen: v5e
topology: v5e:2x2
jax: 0.10.0
libtpu: 0.0.40
codegen_flags: <defaults>
</compile_context>

<pallas_src>
import functools
import math

import jax
import jax.numpy as jnp
from jax import lax
from jax.experimental import pallas as pl
from jax.experimental.pallas import tpu as pltpu

_LN_EPS = 1e-5


# ----------------------------- helpers --------------------------------------

def _round_up(x, m):
    return (x + m - 1) // m * m


def _nbytes(shape, dtype):
    return math.prod(shape) * jnp.dtype(dtype).itemsize


def _pick_row_tile(m, cap):
    """Return (tile, padded_m): tile is a multiple of 8 and <= max(cap, 8)."""
    cap = max(cap, 8)
    if m <= cap:
        t = _round_up(max(m, 1), 8)
        return t, t
    best = 8
    for t in range(8, cap + 1, 8):
        if m % t == 0:
            best = t
    if 2 * best >= cap:            # decent exact divisor -> no padding
        return best, m
    return cap, _round_up(m, cap)  # bounded tile, pad the ragged tail


def _pick_lv_tile(lv, cap=512):
    """Key-axis tile: full LV when small, else largest multiple of 128 dividing LV."""
    if lv <= cap:
        return lv
    t = (cap // 128) * 128
    while t >= 128:
        if lv % t == 0:
            return t
        t -= 128
    return lv   # TODO(synk): tail-masked LV tiling when LV has no 128-multiple divisor.


def _vmem_limit(block_bytes):
    # Never go below the generation defaults; raise when resident blocks are large.
    return int(min(100 * 2**20, max(32 * 2**20, 2 * block_bytes)))


def _normalize_mask(attn_mask, B, H, N, LV):
    """Return (mask4, broadcast_heads); mask4 has shape (B|1, H|1, N, LV).

    Kept in its original (small) dtype — the per-head slice is cast to f32 inside the
    kernel where it is added to the f32 scores.  Batch broadcast is handled by the
    BlockSpec index_map, head broadcast inside the kernel; nothing is broadcast in HBM.
    """
    if attn_mask is None:
        return None, False
    m = jnp.asarray(attn_mask)
    if m.dtype == jnp.bool_:
        # SDPA boolean convention: True = keep.  Convert to a compact additive bf16 mask.
        m = jnp.where(m, 0.0, -1e30).astype(jnp.bfloat16)
    elif not jnp.issubdtype(m.dtype, jnp.floating):
        raise ValueError(f"attn_mask must be float or bool, got {m.dtype}")
    if m.ndim == 2:                                  # (N, LV)
        return m.reshape(1, 1, N, LV), True
    if m.ndim == 3:
        if m.shape[0] == 1:                          # (1, N, LV)
            return m.reshape(1, 1, N, LV), True
        if m.shape[0] == B * H:                      # (B*H, N, LV): SDPA batched layout
            return m.reshape(B, H, N, LV), False
        if m.shape[0] == H:                          # (H, N, LV)
            return m.reshape(1, H, N, LV), False
    if m.ndim == 4:                                  # (B|1, H|1, N, LV)
        return m, (m.shape[1] == 1)
    raise ValueError(f"Unsupported attn_mask shape {m.shape}")


# ------------------- kernel 1: fused LayerNorm + kv projection ---------------

def _ln_matmul_kernel(x_ref, g_ref, b_ref, w_ref, o_ref):
    x = x_ref[...].astype(jnp.float32)                             # (TM, C)
    mean = jnp.mean(x, axis=-1, keepdims=True)
    var = jnp.mean((x - mean) ** 2, axis=-1, keepdims=True)
    xn = (x - mean) * lax.rsqrt(var + _LN_EPS) * g_ref[...] + b_ref[...]
    o_ref[...] = jnp.dot(xn.astype(w_ref.dtype), w_ref[...],       # bf16 MXU, f32 acc
                         preferred_element_type=jnp.float32).astype(o_ref.dtype)


def ln_matmul(x2d, gamma2d, beta2d, w, out_dtype):
    # TODO(synk): for very large C, add a K grid axis with an f32 VMEM accumulator
    #             instead of keeping the full (C, Nout) weight resident.
    M, C = x2d.shape
    Nout = w.shape[1]
    TM, M_pad = _pick_row_tile(M, 512)          # >=512-row tiles ~ HBM roofline
    if M_pad != M:
        x2d = jnp.pad(x2d, ((0, M_pad - M), (0, 0)))
    blk = (2 * (_nbytes((TM, C), x2d.dtype) + _nbytes((C, Nout), w.dtype)
                + _nbytes((TM, Nout), out_dtype))
           + 4 * _nbytes((1, C), gamma2d.dtype))
    out = pl.pallas_call(
        _ln_matmul_kernel,
        out_shape=jax.ShapeDtypeStruct((M_pad, Nout), out_dtype),
        grid=(M_pad // TM,),
        in_specs=[pl.BlockSpec((TM, C), lambda i: (i, 0)),
                  pl.BlockSpec((1, C), lambda i: (0, 0)),
                  pl.BlockSpec((1, C), lambda i: (0, 0)),
                  # TODO(synk): pipeline_mode=pl.Buffered(1) on this constant-index
                  #             weight block (v7x VMEM) once confirmed on target jax.
                  pl.BlockSpec((C, Nout), lambda i: (0, 0))],
        out_specs=pl.BlockSpec((TM, Nout), lambda i: (i, 0)),
        compiler_params=pltpu.CompilerParams(
            dimension_semantics=("parallel",),
            vmem_limit_bytes=_vmem_limit(blk)),
    )(x2d, gamma2d, beta2d, w)
    return out[:M] if M_pad != M else out


# ------ kernel 2: LN + q_proj + flash attention + out_proj + residual --------

def _fused_block_kernel(x_ref, kv_ref, g_ref, b_ref, wq_ref, wo_ref, bo_ref, *rest,
                        num_heads, head_dim, scale, has_mask, broadcast_heads,
                        mxu_dtype):
    if has_mask:
        m_ref, o_ref, q_sc, acc_sc, m_sc, l_sc = rest
    else:
        o_ref, q_sc, acc_sc, m_sc, l_sc = rest
    C = num_heads * head_dim
    lv = pl.program_id(2)

    # --- once per (batch, N-tile): LN + q projection + state init -----------
    @pl.when(lv == 0)
    def _init():
        x_raw = x_ref[0].astype(jnp.float32)                       # (TN, C)
        mean = jnp.mean(x_raw, axis=-1, keepdims=True)
        var = jnp.mean((x_raw - mean) ** 2, axis=-1, keepdims=True)
        xn = (x_raw - mean) * lax.rsqrt(var + _LN_EPS) * g_ref[...] + b_ref[...]
        q = jnp.dot(xn.astype(wq_ref.dtype), wq_ref[...],
                    preferred_element_type=jnp.float32) * scale    # fold SDPA scale into q
        q_sc[...] = q.astype(q_sc.dtype)
        m_sc[...] = jnp.full_like(m_sc, -jnp.inf)
        l_sc[...] = jnp.zeros_like(l_sc)
        acc_sc[...] = jnp.zeros_like(acc_sc)

    # Hoist the head-broadcast mask load/cast out of the head loop.
    if has_mask and broadcast_heads:
        mask_shared = m_ref[0, 0].astype(jnp.float32)              # (TN, TLV)

    # --- online softmax over this LV tile, all heads (heads = column slices) -
    # TODO(synk): batch heads in one dot_general (H as batch dim) so head_dim < 128/256
    #             does not under-fill the MXU contraction on the score matmul.
    for h in range(num_heads):
        lo = h * head_dim
        qh = q_sc[:, lo:lo + head_dim]                 # (TN, hd)  bf16, scaled
        kh = kv_ref[0, :, lo:lo + head_dim]            # (TLV, hd) bf16, no full-tile cast
        vh = kv_ref[0, :, C + lo:C + lo + head_dim]    # (TLV, hd) bf16
        # QK^T: contract the shared last (hd) axis directly (no in-kernel transpose).
        s = lax.dot_general(qh, kh, (((1,), (1,)), ((), ())),
                            preferred_element_type=jnp.float32)    # (TN, TLV) f32
        if has_mask:
            s = s + (mask_shared if broadcast_heads
                     else m_ref[0, h].astype(jnp.float32))
        m_prev = m_sc[:, h:h + 1]                                  # (TN, 1)
        m_new = jnp.maximum(m_prev, jnp.max(s, axis=-1, keepdims=True))
        alpha = jnp.exp(m_prev - m_new)
        p = jnp.exp(s - m_new)
        l_sc[:, h:h + 1] = alpha * l_sc[:, h:h + 1] + jnp.sum(p, axis=-1, keepdims=True)
        m_sc[:, h:h + 1] = m_new
        pv = jnp.dot(p.astype(mxu_dtype), vh, preferred_element_type=jnp.float32)
        acc_sc[:, lo:lo + head_dim] = alpha * acc_sc[:, lo:lo + head_dim] + pv

    # --- last LV tile: normalize, out projection, bias, residual ------------
    @pl.when(lv == pl.num_programs(2) - 1)
    def _finalize():
        inv_l = pl.reciprocal(l_sc[...], approx=True)              # (TN, H), EUP slot
        for h in range(num_heads):
            lo = h * head_dim
            acc_sc[:, lo:lo + head_dim] = acc_sc[:, lo:lo + head_dim] * inv_l[:, h:h + 1]
        out = jnp.dot(acc_sc[...].astype(mxu_dtype), wo_ref[...],
                      preferred_element_type=jnp.float32)          # (TN, C)
        out = out + bo_ref[...].astype(jnp.float32) + x_ref[0].astype(jnp.float32)
        o_ref[0] = out.astype(o_ref.dtype)


def fused_attention_block(x, kv3, mask4, gamma2d, beta2d, wq, wo, bo2d, *,
                          num_heads, head_dim, scale, broadcast_heads, mxu_dtype):
    B, N, C = x.shape
    LV = kv3.shape[1]
    has_mask = mask4 is not None

    TN, N_pad = _pick_row_tile(N, 256)     # bounded query tile, ragged N padded
    TLV = _pick_lv_tile(LV, 512)           # flash tiling along keys

    if N_pad != N:
        x = jnp.pad(x, ((0, 0), (0, N_pad - N), (0, 0)))
        if has_mask:
            mask4 = jnp.pad(mask4, ((0, 0), (0, 0), (0, N_pad - N), (0, 0)))

    grid = (B, N_pad // TN, LV // TLV)

    in_specs = [
        pl.BlockSpec((1, TN, C), lambda b, n, l: (b, n, 0)),        # x (resident over LV)
        pl.BlockSpec((1, TLV, 2 * C), lambda b, n, l: (b, l, 0)),   # kv tile (bf16)
        pl.BlockSpec((1, C), lambda b, n, l: (0, 0)),               # norm1 gamma
        pl.BlockSpec((1, C), lambda b, n, l: (0, 0)),               # norm1 beta
        # TODO(synk): pipeline_mode=pl.Buffered(1) on the constant-index Wq/Wo blocks
        #             (saves one weight buffer each on v7x's 64 MiB VMEM).
        pl.BlockSpec((C, C), lambda b, n, l: (0, 0)),               # Wq (resident)
        pl.BlockSpec((C, C), lambda b, n, l: (0, 0)),               # Wo (resident)
        pl.BlockSpec((1, C), lambda b, n, l: (0, 0)),               # proj bias
    ]
    args = [x, kv3, gamma2d, beta2d, wq, wo, bo2d]
    if has_mask:
        Bm, Hm = mask4.shape[:2]
        if Bm == B:
            mspec = pl.BlockSpec((1, Hm, TN, TLV), lambda b, n, l: (b, 0, n, l))
        else:   # batch-broadcast mask: single HBM block reused for every batch
            mspec = pl.BlockSpec((1, Hm, TN, TLV), lambda b, n, l: (0, 0, n, l))
        in_specs.append(mspec)
        args.append(mask4)

    scratch_shapes = [
        pltpu.VMEM((TN, C), mxu_dtype),              # q (post-LN, pre-scaled)
        pltpu.VMEM((TN, C), jnp.float32),            # attention accumulator (col-sliced)
        pltpu.VMEM((TN, num_heads), jnp.float32),    # running max per head
        pltpu.VMEM((TN, num_heads), jnp.float32),    # running sum per head
    ]

    blk = 2 * (_nbytes((1, TN, C), x.dtype) + _nbytes((1, TLV, 2 * C), kv3.dtype)
               + 2 * _nbytes((C, C), wq.dtype) + 3 * _nbytes((1, C), jnp.float32)
               + _nbytes((1, TN, C), x.dtype))
    if has_mask:
        blk += 2 * _nbytes((1, mask4.shape[1], TN, TLV), mask4.dtype)
    blk += (_nbytes((TN, C), mxu_dtype) + _nbytes((TN, C), jnp.float32)
            + 2 * TN * 128 * 4)

    kern = functools.partial(
        _fused_block_kernel, num_heads=num_heads, head_dim=head_dim, scale=scale,
        has_mask=has_mask, broadcast_heads=broadcast_heads, mxu_dtype=mxu_dtype)

    out = pl.pallas_call(
        kern,
        out_shape=jax.ShapeDtypeStruct((B, N_pad, C), x.dtype),
        grid=grid,
        in_specs=in_specs,
        out_specs=pl.BlockSpec((1, TN, C), lambda b, n, l: (b, n, 0)),
        scratch_shapes=scratch_shapes,
        compiler_params=pltpu.CompilerParams(
            dimension_semantics=("parallel", "parallel", "arbitrary"),
            vmem_limit_bytes=_vmem_limit(blk)),
    )(*args)
    return out[:, :N, :] if N_pad != N else out


# --------------------------- VarAttBlock forward ----------------------------

def var_att_block_forward(x, key_value, attn_mask, params, *, mxu_dtype=jnp.bfloat16):
    B, N, C = x.shape
    _, V, L, _ = key_value.shape
    H = params["num_heads"]
    assert C % H == 0
    hd = C // H
    LV = L * V
    scale = hd ** -0.5                     # torch SDPA default scale

    gamma2d = params["norm1_w"].reshape(1, C).astype(jnp.float32)
    beta2d = params["norm1_b"].reshape(1, C).astype(jnp.float32)
    wq = params["wq"].astype(mxu_dtype)    # (C, C)  = torch q_proj.weight.T
    wkv = params["wkv"].astype(mxu_dtype)  # (C, 2C) = torch kv_proj.weight.T
    wo = params["wo"].astype(mxu_dtype)    # (C, C)  = torch attn.proj.weight.T
    bo2d = params["bo"].reshape(1, C).astype(jnp.float32)

    # Fused LayerNorm(norm1) + kv projection over the flat (B*V*L, C) rows; emitted in
    # bf16 so kernel 2 reads half the HBM bytes and feeds the MXU without re-casting.
    kv = ln_matmul(key_value.reshape(B * V * L, C), gamma2d, beta2d, wkv,
                   out_dtype=mxu_dtype)
    kv3 = kv.reshape(B, LV, 2 * C)   # key position j=l*V+u is flat row b*LV+j (header note)

    mask4, broadcast_heads = _normalize_mask(attn_mask, B, H, N, LV)

    # Note: VarAttBlock.proj (extra Linear) is unused in the torch forward;
    # attn_drop / proj_drop / drop_path are identity (p=0 / eval mode).
    return fused_attention_block(
        x, kv3, mask4, gamma2d, beta2d, wq, wo, bo2d,
        num_heads=H, head_dim=hd, scale=scale,
        broadcast_heads=broadcast_heads, mxu_dtype=mxu_dtype)


# ------------------------- pure-JAX f32 reference ---------------------------

def _reference_forward(x, key_value, attn_mask, params):
    B, N, C = x.shape
    _, V, L, _ = key_value.shape
    H = params["num_heads"]
    hd = C // H
    LV = L * V
    g, b = params["norm1_w"], params["norm1_b"]

    def ln(t):
        mu = t.mean(-1, keepdims=True)
        var = ((t - mu) ** 2).mean(-1, keepdims=True)
        return (t - mu) / jnp.sqrt(var + _LN_EPS) * g + b

    q = ln(x) @ params["wq"]                                       # (B, N, C)
    kv = ln(key_value).reshape(B * V * L, C) @ params["wkv"]       # flat rows, as torch
    kv = kv.reshape(B, LV, 2 * C)
    k = kv[..., :C].reshape(B, LV, H, hd).transpose(0, 2, 1, 3)    # (B, H, LV, hd)
    v = kv[..., C:].reshape(B, LV, H, hd).transpose(0, 2, 1, 3)
    qh = q.reshape(B, N, H, hd).transpose(0, 2, 1, 3)              # (B, H, N, hd)
    s = jnp.einsum("bhnd,bhkd->bhnk", qh, k) * hd ** -0.5
    if attn_mask is not None:
        s = s + jnp.asarray(attn_mask, jnp.float32).reshape(B, H, N, LV)
    p = jax.nn.softmax(s, axis=-1)
    o = jnp.einsum("bhnk,bhkd->bhnd", p, v).transpose(0, 2, 1, 3).reshape(B, N, C)
    o = o @ params["wo"] + params["bo"]
    return x + o


# --------------------------------- main -------------------------------------

if __name__ == "__main__":
    B, N, C = 2, 8, 32
    V, L = 4, 2
    H = 4

    key = jax.random.PRNGKey(0)
    ks = jax.random.split(key, 10)

    x = jax.random.normal(ks[0], (B, N, C), dtype=jnp.float32)
    key_value = jax.random.normal(ks[1], (B, V, L, C), dtype=jnp.float32)
    attn_mask = 0.1 * jax.random.normal(ks[2], (B * H, N, L * V), dtype=jnp.float32)

    params = {
        "num_heads": H,
        "norm1_w": 1.0 + 0.02 * jax.random.normal(ks[3], (C,), dtype=jnp.float32),
        "norm1_b": 0.02 * jax.random.normal(ks[4], (C,), dtype=jnp.float32),
        # weights stored as (in, out) = torch Linear.weight.T ; qkv_bias=False
        "wq": 0.05 * jax.random.normal(ks[5], (C, C), dtype=jnp.float32),
        "wkv": 0.05 * jax.random.normal(ks[6], (C, 2 * C), dtype=jnp.float32),
        "wo": 0.05 * jax.random.normal(ks[7], (C, C), dtype=jnp.float32),
        "bo": 0.02 * jax.random.normal(ks[8], (C,), dtype=jnp.float32),
    }

    out = var_att_block_forward(x, key_value, attn_mask, params)
    jax.block_until_ready(out)
    assert out.shape == (B, N, C)
    assert bool(jnp.all(jnp.isfinite(out)))

    # loose tolerance: kernel runs bf16 MXU + approx reciprocal, reference is f32
    ref = _reference_forward(x, key_value, attn_mask, params)
    max_err = float(jnp.max(jnp.abs(out - ref)))
    assert max_err < 5e-2, f"kernel vs reference max abs err {max_err}"

    out_nomask = var_att_block_forward(x, key_value, None, params)
    jax.block_until_ready(out_nomask)
    ref_nomask = _reference_forward(x, key_value, None, params)
    assert float(jnp.max(jnp.abs(out_nomask - ref_nomask))) < 5e-2

    print("KERNEL_OK")
</pallas_src>

<mosaic_0001>
module attributes {stable_mosaic.version = 11 : i64} {
  func.func @_ln_matmul_kernel(%arg0: i32, %arg1: memref<16x32xf32, #tpu.memory_space<vmem>>, %arg2: memref<1x32xf32, #tpu.memory_space<vmem>>, %arg3: memref<1x32xf32, #tpu.memory_space<vmem>>, %arg4: memref<32x64xbf16, #tpu.memory_space<vmem>>, %arg5: memref<16x64xbf16, #tpu.memory_space<vmem>>) attributes {dimension_semantics = [#tpu.dimension_semantics<parallel>], iteration_bounds = array<i64: 1>, scalar_prefetch = 0 : i64, scratch_operands = 0 : i64, tpu.core_type = #tpu.core_type<tc>, window_params = [{transform_indices = @transform_0, window_bounds = array<i64: 16, 32>}, {pipeline_mode = #tpu.pipeline_mode<synchronous>, transform_indices = @transform_1, window_bounds = array<i64: 1, 32>}, {pipeline_mode = #tpu.pipeline_mode<synchronous>, transform_indices = @transform_2, window_bounds = array<i64: 1, 32>}, {pipeline_mode = #tpu.pipeline_mode<synchronous>, transform_indices = @transform_3, window_bounds = array<i64: 32, 64>}, {transform_indices = @transform_4, window_bounds = array<i64: 16, 64>}]} {
    %c0 = arith.constant 0 : index
    %c0_0 = arith.constant 0 : index
    %0 = vector.load %arg1[%c0, %c0_0] : memref<16x32xf32, #tpu.memory_space<vmem>>, vector<16x32xf32>
    %cst = arith.constant dense<0.000000e+00> : vector<16xf32>
    %1 = vector.multi_reduction <add>, %0, %cst [1] : vector<16x32xf32> to vector<16xf32>
    %2 = vector.shape_cast %1 : vector<16xf32> to vector<16x1xf32>
    %cst_1 = arith.constant 3.200000e+01 : f32
    %3 = vector.broadcast %cst_1 : f32 to vector<16x1xf32>
    %4 = arith.divf %2, %3 : vector<16x1xf32>
    %5 = vector.broadcast %4 : vector<16x1xf32> to vector<16x32xf32>
    %6 = arith.subf %0, %5 : vector<16x32xf32>
    %7 = arith.mulf %6, %6 : vector<16x32xf32>
    %cst_2 = arith.constant dense<0.000000e+00> : vector<16xf32>
    %8 = vector.multi_reduction <add>, %7, %cst_2 [1] : vector<16x32xf32> to vector<16xf32>
    %9 = vector.shape_cast %8 : vector<16xf32> to vector<16x1xf32>
    %cst_3 = arith.constant 3.200000e+01 : f32
    %10 = vector.broadcast %cst_3 : f32 to vector<16x1xf32>
    %11 = arith.divf %9, %10 : vector<16x1xf32>
    %12 = vector.broadcast %4 : vector<16x1xf32> to vector<16x32xf32>
    %13 = arith.subf %0, %12 : vector<16x32xf32>
    %cst_4 = arith.constant 9.99999974E-6 : f32
    %14 = vector.broadcast %cst_4 : f32 to vector<16x1xf32>
    %15 = arith.addf %11, %14 : vector<16x1xf32>
    %16 = math.rsqrt %15 : vector<16x1xf32>
    %17 = vector.broadcast %16 : vector<16x1xf32> to vector<16x32xf32>
    %18 = arith.mulf %13, %17 : vector<16x32xf32>
    %c0_5 = arith.constant 0 : index
    %c0_6 = arith.constant 0 : index
    %19 = vector.load %arg2[%c0_5, %c0_6] : memref<1x32xf32, #tpu.memory_space<vmem>>, vector<1x32xf32>
    %20 = vector.broadcast %19 : vector<1x32xf32> to vector<16x32xf32>
    %21 = arith.mulf %18, %20 : vector<16x32xf32>
    %c0_7 = arith.constant 0 : index
    %c0_8 = arith.constant 0 : index
    %22 = vector.load %arg3[%c0_7, %c0_8] : memref<1x32xf32, #tpu.memory_space<vmem>>, vector<1x32xf32>
    %23 = vector.broadcast %22 : vector<1x32xf32> to vector<16x32xf32>
    %24 = arith.addf %21, %23 : vector<16x32xf32>
    %25 = arith.truncf %24 : vector<16x32xf32> to vector<16x32xbf16>
    %c0_9 = arith.constant 0 : index
    %c0_10 = arith.constant 0 : index
    %26 = vector.load %arg4[%c0_9, %c0_10] : memref<32x64xbf16, #tpu.memory_space<vmem>>, vector<32x64xbf16>
    %cst_11 = arith.constant dense<0.000000e+00> : vector<16x64xf32>
    %27 = tpu.matmul %25, %26, %cst_11 {dimension_numbers = #tpu.dot_dimension_numbers<[1], [0], [0], [1], [0, 0, 1, 1], [], []>} : vector<16x32xbf16>, vector<32x64xbf16>, vector<16x64xf32> -> vector<16x64xf32>
    %28 = arith.truncf %27 : vector<16x64xf32> to vector<16x64xbf16>
    %c0_12 = arith.constant 0 : index
    %c0_13 = arith.constant 0 : index
    %29 = vector.load %arg5[%c0_12, %c0_13] : memref<16x64xbf16, #tpu.memory_space<vmem>>, vector<16x64xbf16>
    tpu.vector_store %arg5[%c0_12, %c0_13], %28 {strides = array<i32>} : memref<16x64xbf16, #tpu.memory_space<vmem>>, vector<16x64xbf16>,
    return
  }
  func.func @transform_0(%arg0: i32) -> (i32, i32) {
    %c0_i32 = arith.constant 0 : i32
    %c0_i32_0 = arith.constant 0 : i32
    return %arg0, %c0_i32 : i32, i32
  }
  func.func @transform_1(%arg0: i32) -> (i32, i32) {
    %c0_i32 = arith.constant 0 : i32
    %c0_i32_0 = arith.constant 0 : i32
    %c0_i32_1 = arith.constant 0 : i32
    return %c0_i32, %c0_i32_0 : i32, i32
  }
  func.func @transform_2(%arg0: i32) -> (i32, i32) {
    %c0_i32 = arith.constant 0 : i32
    %c0_i32_0 = arith.constant 0 : i32
    %c0_i32_1 = arith.constant 0 : i32
    return %c0_i32, %c0_i32_0 : i32, i32
  }
  func.func @transform_3(%arg0: i32) -> (i32, i32) {
    %c0_i32 = arith.constant 0 : i32
    %c0_i32_0 = arith.constant 0 : i32
    %c0_i32_1 = arith.constant 0 : i32
    return %c0_i32, %c0_i32_0 : i32, i32
  }
  func.func @transform_4(%arg0: i32) -> (i32, i32) {
    %c0_i32 = arith.constant 0 : i32
    %c0_i32_0 = arith.constant 0 : i32
    return %arg0, %c0_i32 : i32, i32
  }
}

</mosaic_0001>

<llo_original>
// kernel: tpu_custom_call.1
$region0: #{tpu_custom_call.1}
  #allocation0 [shape = 'u32[]', space=smem, size = 0x4, offset = 0x4, fixed_abs, tag = 'smem constant byte address 0x4 - core index']
  #allocation1 [shape = 'u32[72,128]{1,0:T(1,128)}', space=vmem, size = 0x9000, scoped, tag = 'internal scratch']
  %s0 = inlined_call_operand.hbm [shape: f32[16,32], index: 0, kind: input, shape index: {}]
  %s1 = inlined_call_operand.hbm [shape: f32[1,32], index: 1, kind: input, shape index: {}]
  %s2 = inlined_call_operand.vmem [shape: f32[1,32], index: 2, kind: input, shape index: {}]
  %s3 = inlined_call_operand.hbm [shape: bf16[32,64], index: 3, kind: input, shape index: {}]
  %s4 = inlined_call_operand.hbm [shape: bf16[16,64], index: 4, kind: output, shape index: {}]
  %s5 = sld [smem:[#allocation0]]
  $region38: #{tpu_custom_call.1} parent=0
    _
  %s7 = ssub.s32 1, %s5
  %s8 = scalar_select 0, %s7, %s5
  $region1: #{tpu_custom_call.1} parent=0
    #allocation2 [shape = 'u8[8192]{0}', space=vmem, size = 0x2000, scoped, tag = 'input window, operand 0, single buffered']
    #allocation3 [shape = 's32[1]{0}', space=sflag, size = 0x4, scoped, tag = 'scoped memory for tpu_custom_call.1']
    #allocation4 [shape = 's32[1]{0}', space=sflag, size = 0x4, scoped, tag = 'scoped memory for tpu_custom_call.1']
    #allocation5 [shape = 'u8[512]{0}', space=vmem, size = 0x400, scoped, tag = 'input window, operand 1, single buffered']
    #allocation6 [shape = 's32[1]{0}', space=sflag, size = 0x4, scoped, tag = 'scoped memory for tpu_custom_call.1']
    #allocation7 [shape = 'u8[8192]{0}', space=vmem, size = 0x2000, scoped, tag = 'input window, operand 3, single buffered']
    #allocation8 [shape = 'u8[4096]{0}', space=vmem, size = 0x1000, scoped, tag = 'output window, operand 0, single buffered']
    %9 = vsyncpa [#allocation3], 0
    %10 = vsyncpa [#allocation6], 0
    %11 = vsyncpa [#allocation4], 0
    // Predicated region
    $region2: #{tpu_custom_call.1} parent=1 // pred_check
      _
    $region3: #{tpu_custom_call.1} parent=1 // pred_check_branch
      %13 = sbr.rel (0) target = $region5
    $region4: #{tpu_custom_call.1} parent=1 // pred_region
      %15 = vsyncadd [#allocation3], 0
      %s16 = sshll.u32 %s0, 4
      %s17 = int_to_ptr.hbm [resolvable:$true] %s16
      %s18 = sshll.u32 [#allocation2], 4
      %s19 = int_to_ptr.vmem [resolvable:$true] %s18
      %24 = dma.hbm_to_vmem [thread:$0]  %s17, 256, %s19, [#allocation3], 128, 128, 8
    $region5: #{tpu_custom_call.1} parent=1 // pred_fallthru
      _
    // Predicated region
    $region6: #{tpu_custom_call.1} parent=1 // pred_check
      _
    $region7: #{tpu_custom_call.1} parent=1 // pred_check_branch
      %26 = sbr.rel (0) target = $region9
    $region8: #{tpu_custom_call.1} parent=1 // pred_region
      %28 = vsyncadd [#allocation6], 0
      %s30 = sshll.u32 %s1, 4
      %s31 = int_to_ptr.hbm [resolvable:$true] %s30
      %s32 = sshll.u32 [#allocation5], 4
      %s33 = int_to_ptr.vmem [resolvable:$true] %s32
      %35 = dma.hbm_to_vmem [thread:$0]  %s31, 16, %s33, [#allocation6]
    $region9: #{tpu_custom_call.1} parent=1 // pred_fallthru
      _
    // Predicated region
    $region10: #{tpu_custom_call.1} parent=1 // pred_check
      _
    $region11: #{tpu_custom_call.1} parent=1 // pred_check_branch
      %37 = sbr.rel (0) target = $region13
    $region12: #{tpu_custom_call.1} parent=1 // pred_region
      _
    $region13: #{tpu_custom_call.1} parent=1 // pred_fallthru
      _
    // Predicated region
    $region14: #{tpu_custom_call.1} parent=1 // pred_check
      _
    $region15: #{tpu_custom_call.1} parent=1 // pred_check_branch
      %39 = sbr.rel (0) target = $region17
    $region16: #{tpu_custom_call.1} parent=1 // pred_region
      %41 = vsyncadd [#allocation6], 0
      %s42 = sshll.u32 %s3, 4
      %s43 = int_to_ptr.hbm [resolvable:$true] %s42
      %s44 = sshll.u32 [#allocation7], 4
      %s45 = int_to_ptr.vmem [resolvable:$true] %s44
      %50 = dma.hbm_to_vmem [thread:$0]  %s43, 256, %s45, [#allocation6], 64, 64, 4
    $region17: #{tpu_custom_call.1} parent=1 // pred_fallthru
      _
    // Predicated region
    $region18: #{tpu_custom_call.1} parent=1 // pred_check
      _
    $region19: #{tpu_custom_call.1} parent=1 // pred_check_branch
      %52 = sbr.rel (0) target = $region21
    $region20: #{tpu_custom_call.1} parent=1 // pred_region
      %54 = dma.done [#allocation3], 256
    $region21: #{tpu_custom_call.1} parent=1 // pred_fallthru
      _
    // Predicated region
    $region22: #{tpu_custom_call.1} parent=1 // pred_check
      _
    $region23: #{tpu_custom_call.1} parent=1 // pred_check_branch
      %56 = sbr.rel (0) target = $region25
    $region24: #{tpu_custom_call.1} parent=1 // pred_region
      %58 = dma.done [#allocation6], 16
    $region25: #{tpu_custom_call.1} parent=1 // pred_fallthru
      _
    // Predicated region
    $region26: #{tpu_custom_call.1} parent=1 // pred_check
      _
    $region27: #{tpu_custom_call.1} parent=1 // pred_check_branch
      %60 = sbr.rel (0) target = $region29
    $region28: #{tpu_custom_call.1} parent=1 // pred_region
      %62 = dma.done [#allocation6], 256
    $region29: #{tpu_custom_call.1} parent=1 // pred_fallthru
      _
    %v64 = vld [vmem:[#allocation2] sm:$0xff]
    %v65 = vld [vmem:[#allocation2 + $0x8] sm:$0xff]
    %vm66 = vcmask 261120
    %v67 = vsel %vm66, %v64, 0.0
    %68 = vadd.xlane.f32.xlu0 %v67
    %v69 = vpop.xlane.xlu0 %68
    %v70 = vsel %vm66, %v65, 0.0
    %71 = vadd.xlane.f32.xlu0 %v70
    %v72 = vpop.xlane.xlu0 %71
    %v73 = vrcp.pop 32.0
    %v74 = vmul.f32 32.0, %v73
    %v75 = vsub.f32 1.0, %v74
    %v76 = vmul.f32 %v73, %v75
    %v77 = vadd.f32 %v73, %v76
    %vm78 = vweird.f32 %v73
    %v79 = vsel %vm78, %v73, %v77
    %v80 = vmul.f32 %v69, %v79
    %v81 = vmul.f32 %v72, %v79
    %v82 = vsub.f32 %v64, %v80
    %v83 = vsub.f32 %v65, %v81
    %v84 = vmul.f32 %v82, %v82
    %v85 = vmul.f32 %v83, %v83
    %v86 = vsel %vm66, %v84, 0.0
    %87 = vadd.xlane.f32.xlu0 %v86
    %v88 = vpop.xlane.xlu0 %87
    %v89 = vsel %vm66, %v85, 0.0
    %90 = vadd.xlane.f32.xlu0 %v89
    %v91 = vpop.xlane.xlu0 %90
    %v92 = vmul.f32 %v88, %v79
    %v93 = vmul.f32 %v91, %v79
    %v94 = vadd.f32 %v92, 1e-05
    %v95 = vadd.f32 %v93, 1e-05
    %v96 = vrsqrt.pop %v94
    %v97 = vmul.f32 %v96, %v94
    %v98 = vmul.f32 %v97, %v96
    %v99 = vmul.f32 0.5, %v98
    %v100 = vsub.f32 1.5, %v99
    %v101 = vmul.f32 %v96, %v100
    %vm102 = vweird.f32 %v94
    %vm103 = vweird.f32 %v96
    %vm104 = vmor %vm102, %vm103
    %v105 = vsel %vm104, %v96, %v101
    %v106 = vrsqrt.pop %v95
    %v107 = vmul.f32 %v106, %v95
    %v108 = vmul.f32 %v107, %v106
    %v109 = vmul.f32 0.5, %v108
    %v110 = vsub.f32 1.5, %v109
    %v111 = vmul.f32 %v106, %v110
    %vm112 = vweird.f32 %v95
    %vm113 = vweird.f32 %v106
    %vm114 = vmor %vm112, %vm113
    %v115 = vsel %vm114, %v106, %v111
    %v116 = vmul.f32 %v82, %v105
    %v117 = vmul.f32 %v83, %v115
    %v118 = vld [vmem:[#allocation5] sm:$0x1]
    %v120 = vperm.slane %v118, 0
    %v122 = vmul.f32 %v116, %v120
    %v123 = vmul.f32 %v117, %v120
    %v124 = vld [vmem:[%s2] sm:$0x1]
    %v126 = vperm.slane %v124, 0
    %v128 = vadd.f32 %v122, %v126
    %v129 = vadd.f32 %v123, %v126
    %v130 = vpack.c.bf16 %v129, %v128
    %v131 = vld [vmem:[#allocation7] sm:$0xf]
    %v132 = vld [vmem:[#allocation7 + $0x4] sm:$0xf]
    %v133 = vld [vmem:[#allocation7 + $0x8] sm:$0xf]
    %v134 = vld [vmem:[#allocation7 + $0xc] sm:$0xf]
    %v139 = vunpack.c.l.b16 %v131
    %v140 = vunpack.c.l.b16 %v132
    %v141 = vunpack.c.l.b16 %v133
    %v142 = vunpack.c.l.b16 %v134
    %v143 = vpack.c.b16 %v140, %v139
    %v144 = vpack.c.b16 %v142, %v141
    %v148 = vsel %vm66, %v130, 0
    %150 = vmatpush.bf16.msra.mxu0 0
    %151 = vmatpush.bf16.msra.mxu0 0
    %152 = vmatpush.bf16.msra.mxu0 0
    %153 = vmatpush.bf16.msra.mxu0 0
    %154 = vmatpush.bf16.msra.mxu0 0
    %155 = vmatpush.bf16.msra.mxu0 0
    %156 = vmatpush.bf16.msra.mxu0 %v144
    %157 = vmatpush.bf16.msra.mxu0 %v143
    %158 = vmatmul.bf16.gmra.mxu0 %v148
    %v159 = vpop.f32.mrf.mxu0
    %v160 = vadd.f32 0.0, %v159
    %v161 = vpop.f32.mrf.mxu0
    %v162 = vadd.f32 0.0, %v161
    %163 = vdwg.mxu0
    %v164 = vpack.c.bf16 %v160, %v160
    %v165 = vpack.c.bf16 %v162, %v162
    %vm166 = vcmask 519168
    %167 = vst.msk [vmem:[#allocation8] sm:$0xf] %vm166, %v164
    %168 = vst.msk [vmem:[#allocation8 + $0x4] sm:$0xf] %vm166, %v165
    // Predicated region
    $region30: #{tpu_custom_call.1} parent=1 // pred_check
      _
    $region31: #{tpu_custom_call.1} parent=1 // pred_check_branch
      %170 = sbr.rel (0) target = $region33
    $region32: #{tpu_custom_call.1} parent=1 // pred_region
      %172 = vsyncadd [#allocation4], 0
      %s173 = sshll.u32 [#allocation8], 4
      %s174 = int_to_ptr.vmem [resolvable:$true] %s173
      %s175 = sshll.u32 %s4, 4
      %s176 = int_to_ptr.hbm [resolvable:$true] %s175
      %181 = dma.vmem_to_hbm [thread:$0]  %s174, 128, %s176, [#allocation4], 64, 64, 4
    $region33: #{tpu_custom_call.1} parent=1 // pred_fallthru
      _
    // Predicated region
    $region34: #{tpu_custom_call.1} parent=1 // pred_check
      _
    $region35: #{tpu_custom_call.1} parent=1 // pred_check_branch
      %183 = sbr.rel (0) target = $region37
    $region36: #{tpu_custom_call.1} parent=1 // pred_region
      %185 = dma.done [#allocation4], 128
    $region37: #{tpu_custom_call.1} parent=1 // pred_fallthru
      _
    %186 = vsyncpa [#allocation3], 1
    %187 = vsyncpa [#allocation6], 1
    %188 = vsyncpa [#allocation4], 1

</llo_original>
